<compile_context>
chip_gen: v5e
topology: v5e:2x2
jax: 0.10.0
libtpu: 0.0.40
codegen_flags: <defaults>
</compile_context>

<pallas_src>
import jax
import jax.numpy as jnp
from jax.experimental import pallas as pl
from jax.experimental.pallas import tpu as pltpu


def _convs_block_kernel(h_ref, adj_ref, w_ref, b_ref, gamma_ref, beta_ref, out_ref):
    """Fused L x (BatchNorm1d -> GCN aggregate+linear -> ReLU), concat output."""
    num_layers = w_ref.shape[0]
    cp = w_ref.shape[-1]

    adj = adj_ref[...]                                  # [N, N] bf16, VMEM-resident
    h = h_ref[...].astype(jnp.float32)                  # [N, Cp] f32 activations

    # L is tiny (3) -> static unroll; all indices/slices below are static and
    # the per-layer output stores land on 128-lane-aligned offsets (unmasked).
    for l in range(num_layers):
        # ---- BatchNorm1d over the node/batch axis (training mode), f32 ----
        mean = jnp.mean(h, axis=0, keepdims=True)                     # [1, Cp]
        centered = h - mean
        var = jnp.mean(centered * centered, axis=0, keepdims=True)    # biased var
        h_bn = centered * jax.lax.rsqrt(var + 1e-5)
        h_bn = h_bn * gamma_ref[l] + beta_ref[l]                      # affine

        # ---- GCNConv: A_hat @ (h_bn @ W) + b ; MXU bf16, f32 accumulate ----
        hw = jnp.dot(h_bn.astype(jnp.bfloat16), w_ref[l],
                     preferred_element_type=jnp.float32)              # [N, Cp]
        agg = jnp.dot(adj, hw.astype(jnp.bfloat16),
                      preferred_element_type=jnp.float32)             # [N, Cp]

        # ---- ReLU; result feeds next layer and the lane-dense concat slab ----
        h = jnp.maximum(agg + b_ref[l], 0.0)
        out_ref[:, l * cp:(l + 1) * cp] = h.astype(out_ref.dtype)


def build_normalized_adj(edge_index, num_nodes, dtype=jnp.bfloat16):
    """Dense GCN-normalized adjacency (PyG gcn_norm convention).

    Stored so that `adj @ h` aggregates source features into destination
    nodes; duplicate edges are summed, graph is NOT symmetrized.
    """
    src, dst = edge_index[0], edge_index[1]
    a = jnp.zeros((num_nodes, num_nodes), jnp.float32)
    a = a.at[dst, src].add(1.0)                       # duplicate edges summed
    a = a + jnp.eye(num_nodes, dtype=jnp.float32)     # self loops
    deg = jnp.sum(a, axis=1)                          # in-degree (+ self loop)
    d_inv_sqrt = jnp.where(deg > 0, jax.lax.rsqrt(deg), 0.0)
    return (a * d_inv_sqrt[:, None] * d_inv_sqrt[None, :]).astype(dtype)


def convs_block_forward(x, edge_index, params):
    """Mirrors ConvsBlock.forward: per-layer BN -> conv -> act, then concat."""
    n, c = x.shape
    num_layers = len(params)
    cp = max(128, ((c + 127) // 128) * 128)           # lane-dense channel pad

    # TODO(synk): node axis kept as one VMEM-resident block (BN needs *global*
    # batch stats and BN running_mean/var buffers are not emulated); a large-N
    # version needs a two-pass BN + the adjacency tiled over a reduction grid
    # axis ("arbitrary") with the node-tile axis "parallel" for megacore.
    adj = build_normalized_adj(edge_index, n, dtype=jnp.bfloat16)

    pad_c = cp - c
    x_p = jnp.pad(x.astype(jnp.float32), ((0, 0), (0, pad_c)))
    # Weights pre-cast to bf16 once here (MXU operand dtype); BN params stay f32.
    w_s = jnp.stack([jnp.pad(w, ((0, pad_c), (0, pad_c)))
                     for (w, _, _, _) in params]).astype(jnp.bfloat16)
    b_s = jnp.stack([jnp.pad(b, ((0, 0), (0, pad_c))) for (_, b, _, _) in params])
    g_s = jnp.stack([jnp.pad(g, ((0, 0), (0, pad_c))) for (_, _, g, _) in params])
    be_s = jnp.stack([jnp.pad(be, ((0, 0), (0, pad_c))) for (_, _, _, be) in params])

    vmem = pl.BlockSpec(memory_space=pltpu.MemorySpace.VMEM)
    out_padded = pl.pallas_call(
        _convs_block_kernel,
        out_shape=jax.ShapeDtypeStruct((n, num_layers * cp), jnp.float32),
        in_specs=[vmem] * 6,
        out_specs=vmem,
    )(x_p, adj, w_s, b_s, g_s, be_s)

    # Strip channel padding per layer and concat (cheap glue outside kernel).
    return jnp.concatenate(
        [out_padded[:, l * cp:l * cp + c] for l in range(num_layers)], axis=-1)


def init_params(key, layers, cldim):
    params = []
    for _ in range(layers):
        key, kw, kb = jax.random.split(key, 3)
        scale = 1.0 / jnp.sqrt(jnp.float32(cldim))
        w = jax.random.uniform(kw, (cldim, cldim), jnp.float32, -scale, scale)
        b = jax.random.uniform(kb, (1, cldim), jnp.float32, -scale, scale)
        gamma = jnp.ones((1, cldim), jnp.float32)
        beta = jnp.zeros((1, cldim), jnp.float32)
        params.append((w, b, gamma, beta))
    return params


if __name__ == "__main__":
    LAYERS = 3
    CLDIM = 32
    NUM_NODES = 16
    NUM_EDGES = 40

    key = jax.random.PRNGKey(0)
    kx, ke, kp = jax.random.split(key, 3)

    x = jax.random.normal(kx, (NUM_NODES, CLDIM), jnp.float32)
    edge_index = jax.random.randint(ke, (2, NUM_EDGES), 0, NUM_NODES, jnp.int32)
    params = init_params(kp, LAYERS, CLDIM)

    out = convs_block_forward(x, edge_index, params)
    out = jax.block_until_ready(out)
    assert out.shape == (NUM_NODES, LAYERS * CLDIM), out.shape
    assert bool(jnp.all(jnp.isfinite(out)))
    print("KERNEL_OK")
</pallas_src>

<mosaic_0001>
module attributes {stable_mosaic.version = 11 : i64} {
  func.func @_convs_block_kernel(%arg0: memref<16x128xf32, #tpu.memory_space<vmem>>, %arg1: memref<16x16xbf16, #tpu.memory_space<vmem>>, %arg2: memref<3x128x128xbf16, #tpu.memory_space<vmem>>, %arg3: memref<3x1x128xf32, #tpu.memory_space<vmem>>, %arg4: memref<3x1x128xf32, #tpu.memory_space<vmem>>, %arg5: memref<3x1x128xf32, #tpu.memory_space<vmem>>, %arg6: memref<16x384xf32, #tpu.memory_space<vmem>>) attributes {dimension_semantics = [], scalar_prefetch = 0 : i64, scratch_operands = 0 : i64, tpu.core_type = #tpu.core_type<tc>} {
    %c0 = arith.constant 0 : index
    %c0_0 = arith.constant 0 : index
    %0 = vector.load %arg1[%c0, %c0_0] : memref<16x16xbf16, #tpu.memory_space<vmem>>, vector<16x16xbf16>
    %c0_1 = arith.constant 0 : index
    %c0_2 = arith.constant 0 : index
    %1 = vector.load %arg0[%c0_1, %c0_2] : memref<16x128xf32, #tpu.memory_space<vmem>>, vector<16x128xf32>
    %cst = arith.constant dense<0.000000e+00> : vector<128xf32>
    %2 = vector.multi_reduction <add>, %1, %cst [0] : vector<16x128xf32> to vector<128xf32>
    %3 = vector.shape_cast %2 : vector<128xf32> to vector<1x128xf32>
    %cst_3 = arith.constant 1.600000e+01 : f32
    %4 = vector.broadcast %cst_3 : f32 to vector<1x128xf32>
    %5 = arith.divf %3, %4 : vector<1x128xf32>
    %6 = vector.broadcast %5 : vector<1x128xf32> to vector<16x128xf32>
    %7 = arith.subf %1, %6 : vector<16x128xf32>
    %8 = arith.mulf %7, %7 : vector<16x128xf32>
    %cst_4 = arith.constant dense<0.000000e+00> : vector<128xf32>
    %9 = vector.multi_reduction <add>, %8, %cst_4 [0] : vector<16x128xf32> to vector<128xf32>
    %10 = vector.shape_cast %9 : vector<128xf32> to vector<1x128xf32>
    %cst_5 = arith.constant 1.600000e+01 : f32
    %11 = vector.broadcast %cst_5 : f32 to vector<1x128xf32>
    %12 = arith.divf %10, %11 : vector<1x128xf32>
    %cst_6 = arith.constant 9.99999974E-6 : f32
    %13 = vector.broadcast %cst_6 : f32 to vector<1x128xf32>
    %14 = arith.addf %12, %13 : vector<1x128xf32>
    %15 = math.rsqrt %14 : vector<1x128xf32>
    %16 = vector.broadcast %15 : vector<1x128xf32> to vector<16x128xf32>
    %17 = arith.mulf %7, %16 : vector<16x128xf32>
    %c0_7 = arith.constant 0 : index
    %c0_8 = arith.constant 0 : index
    %c0_9 = arith.constant 0 : index
    %18 = vector.load %arg4[%c0_7, %c0_8, %c0_9] : memref<3x1x128xf32, #tpu.memory_space<vmem>>, vector<1x1x128xf32>
    %19 = vector.shape_cast %18 : vector<1x1x128xf32> to vector<1x128xf32>
    %20 = vector.broadcast %19 : vector<1x128xf32> to vector<16x128xf32>
    %21 = arith.mulf %17, %20 : vector<16x128xf32>
    %c0_10 = arith.constant 0 : index
    %c0_11 = arith.constant 0 : index
    %c0_12 = arith.constant 0 : index
    %22 = vector.load %arg5[%c0_10, %c0_11, %c0_12] : memref<3x1x128xf32, #tpu.memory_space<vmem>>, vector<1x1x128xf32>
    %23 = vector.shape_cast %22 : vector<1x1x128xf32> to vector<1x128xf32>
    %24 = vector.broadcast %23 : vector<1x128xf32> to vector<16x128xf32>
    %25 = arith.addf %21, %24 : vector<16x128xf32>
    %26 = arith.truncf %25 : vector<16x128xf32> to vector<16x128xbf16>
    %c0_13 = arith.constant 0 : index
    %c0_14 = arith.constant 0 : index
    %c0_15 = arith.constant 0 : index
    %27 = vector.load %arg2[%c0_13, %c0_14, %c0_15] : memref<3x128x128xbf16, #tpu.memory_space<vmem>>, vector<1x128x128xbf16>
    %28 = vector.shape_cast %27 : vector<1x128x128xbf16> to vector<128x128xbf16>
    %cst_16 = arith.constant dense<0.000000e+00> : vector<16x128xf32>
    %29 = tpu.matmul %26, %28, %cst_16 {dimension_numbers = #tpu.dot_dimension_numbers<[1], [0], [0], [1], [0, 0, 1, 1], [], []>} : vector<16x128xbf16>, vector<128x128xbf16>, vector<16x128xf32> -> vector<16x128xf32>
    %30 = arith.truncf %29 : vector<16x128xf32> to vector<16x128xbf16>
    %cst_17 = arith.constant dense<0.000000e+00> : vector<16x128xf32>
    %31 = tpu.matmul %0, %30, %cst_17 {dimension_numbers = #tpu.dot_dimension_numbers<[1], [0], [0], [1], [0, 0, 1, 1], [], []>} : vector<16x16xbf16>, vector<16x128xbf16>, vector<16x128xf32> -> vector<16x128xf32>
    %c0_18 = arith.constant 0 : index
    %c0_19 = arith.constant 0 : index
    %c0_20 = arith.constant 0 : index
    %32 = vector.load %arg3[%c0_18, %c0_19, %c0_20] : memref<3x1x128xf32, #tpu.memory_space<vmem>>, vector<1x1x128xf32>
    %33 = vector.shape_cast %32 : vector<1x1x128xf32> to vector<1x128xf32>
    %34 = vector.broadcast %33 : vector<1x128xf32> to vector<16x128xf32>
    %35 = arith.addf %31, %34 : vector<16x128xf32>
    %cst_21 = arith.constant 0.000000e+00 : f32
    %36 = vector.broadcast %cst_21 : f32 to vector<16x128xf32>
    %37 = arith.maximumf %35, %36 : vector<16x128xf32>
    %c0_22 = arith.constant 0 : index
    %c0_23 = arith.constant 0 : index
    %38 = vector.load %arg6[%c0_22, %c0_23] : memref<16x384xf32, #tpu.memory_space<vmem>>, vector<16x128xf32>
    tpu.vector_store %arg6[%c0_22, %c0_23], %37 {strides = array<i32>} : memref<16x384xf32, #tpu.memory_space<vmem>>, vector<16x128xf32>,
    %cst_24 = arith.constant dense<0.000000e+00> : vector<128xf32>
    %39 = vector.multi_reduction <add>, %37, %cst_24 [0] : vector<16x128xf32> to vector<128xf32>
    %40 = vector.shape_cast %39 : vector<128xf32> to vector<1x128xf32>
    %cst_25 = arith.constant 1.600000e+01 : f32
    %41 = vector.broadcast %cst_25 : f32 to vector<1x128xf32>
    %42 = arith.divf %40, %41 : vector<1x128xf32>
    %43 = vector.broadcast %42 : vector<1x128xf32> to vector<16x128xf32>
    %44 = arith.subf %37, %43 : vector<16x128xf32>
    %45 = arith.mulf %44, %44 : vector<16x128xf32>
    %cst_26 = arith.constant dense<0.000000e+00> : vector<128xf32>
    %46 = vector.multi_reduction <add>, %45, %cst_26 [0] : vector<16x128xf32> to vector<128xf32>
    %47 = vector.shape_cast %46 : vector<128xf32> to vector<1x128xf32>
    %cst_27 = arith.constant 1.600000e+01 : f32
    %48 = vector.broadcast %cst_27 : f32 to vector<1x128xf32>
    %49 = arith.divf %47, %48 : vector<1x128xf32>
    %cst_28 = arith.constant 9.99999974E-6 : f32
    %50 = vector.broadcast %cst_28 : f32 to vector<1x128xf32>
    %51 = arith.addf %49, %50 : vector<1x128xf32>
    %52 = math.rsqrt %51 : vector<1x128xf32>
    %53 = vector.broadcast %52 : vector<1x128xf32> to vector<16x128xf32>
    %54 = arith.mulf %44, %53 : vector<16x128xf32>
    %c1 = arith.constant 1 : index
    %c0_29 = arith.constant 0 : index
    %c0_30 = arith.constant 0 : index
    %55 = vector.load %arg4[%c1, %c0_29, %c0_30] : memref<3x1x128xf32, #tpu.memory_space<vmem>>, vector<1x1x128xf32>
    %56 = vector.shape_cast %55 : vector<1x1x128xf32> to vector<1x128xf32>
    %57 = vector.broadcast %56 : vector<1x128xf32> to vector<16x128xf32>
    %58 = arith.mulf %54, %57 : vector<16x128xf32>
    %c1_31 = arith.constant 1 : index
    %c0_32 = arith.constant 0 : index
    %c0_33 = arith.constant 0 : index
    %59 = vector.load %arg5[%c1_31, %c0_32, %c0_33] : memref<3x1x128xf32, #tpu.memory_space<vmem>>, vector<1x1x128xf32>
    %60 = vector.shape_cast %59 : vector<1x1x128xf32> to vector<1x128xf32>
    %61 = vector.broadcast %60 : vector<1x128xf32> to vector<16x128xf32>
    %62 = arith.addf %58, %61 : vector<16x128xf32>
    %63 = arith.truncf %62 : vector<16x128xf32> to vector<16x128xbf16>
    %c1_34 = arith.constant 1 : index
    %c0_35 = arith.constant 0 : index
    %c0_36 = arith.constant 0 : index
    %64 = vector.load %arg2[%c1_34, %c0_35, %c0_36] : memref<3x128x128xbf16, #tpu.memory_space<vmem>>, vector<1x128x128xbf16>
    %65 = vector.shape_cast %64 : vector<1x128x128xbf16> to vector<128x128xbf16>
    %cst_37 = arith.constant dense<0.000000e+00> : vector<16x128xf32>
    %66 = tpu.matmul %63, %65, %cst_37 {dimension_numbers = #tpu.dot_dimension_numbers<[1], [0], [0], [1], [0, 0, 1, 1], [], []>} : vector<16x128xbf16>, vector<128x128xbf16>, vector<16x128xf32> -> vector<16x128xf32>
    %67 = arith.truncf %66 : vector<16x128xf32> to vector<16x128xbf16>
    %cst_38 = arith.constant dense<0.000000e+00> : vector<16x128xf32>
    %68 = tpu.matmul %0, %67, %cst_38 {dimension_numbers = #tpu.dot_dimension_numbers<[1], [0], [0], [1], [0, 0, 1, 1], [], []>} : vector<16x16xbf16>, vector<16x128xbf16>, vector<16x128xf32> -> vector<16x128xf32>
    %c1_39 = arith.constant 1 : index
    %c0_40 = arith.constant 0 : index
    %c0_41 = arith.constant 0 : index
    %69 = vector.load %arg3[%c1_39, %c0_40, %c0_41] : memref<3x1x128xf32, #tpu.memory_space<vmem>>, vector<1x1x128xf32>
    %70 = vector.shape_cast %69 : vector<1x1x128xf32> to vector<1x128xf32>
    %71 = vector.broadcast %70 : vector<1x128xf32> to vector<16x128xf32>
    %72 = arith.addf %68, %71 : vector<16x128xf32>
    %cst_42 = arith.constant 0.000000e+00 : f32
    %73 = vector.broadcast %cst_42 : f32 to vector<16x128xf32>
    %74 = arith.maximumf %72, %73 : vector<16x128xf32>
    %c0_43 = arith.constant 0 : index
    %c128 = arith.constant 128 : index
    %75 = vector.load %arg6[%c0_43, %c128] : memref<16x384xf32, #tpu.memory_space<vmem>>, vector<16x128xf32>
    tpu.vector_store %arg6[%c0_43, %c128], %74 {strides = array<i32>} : memref<16x384xf32, #tpu.memory_space<vmem>>, vector<16x128xf32>,
    %cst_44 = arith.constant dense<0.000000e+00> : vector<128xf32>
    %76 = vector.multi_reduction <add>, %74, %cst_44 [0] : vector<16x128xf32> to vector<128xf32>
    %77 = vector.shape_cast %76 : vector<128xf32> to vector<1x128xf32>
    %cst_45 = arith.constant 1.600000e+01 : f32
    %78 = vector.broadcast %cst_45 : f32 to vector<1x128xf32>
    %79 = arith.divf %77, %78 : vector<1x128xf32>
    %80 = vector.broadcast %79 : vector<1x128xf32> to vector<16x128xf32>
    %81 = arith.subf %74, %80 : vector<16x128xf32>
    %82 = arith.mulf %81, %81 : vector<16x128xf32>
    %cst_46 = arith.constant dense<0.000000e+00> : vector<128xf32>
    %83 = vector.multi_reduction <add>, %82, %cst_46 [0] : vector<16x128xf32> to vector<128xf32>
    %84 = vector.shape_cast %83 : vector<128xf32> to vector<1x128xf32>
    %cst_47 = arith.constant 1.600000e+01 : f32
    %85 = vector.broadcast %cst_47 : f32 to vector<1x128xf32>
    %86 = arith.divf %84, %85 : vector<1x128xf32>
    %cst_48 = arith.constant 9.99999974E-6 : f32
    %87 = vector.broadcast %cst_48 : f32 to vector<1x128xf32>
    %88 = arith.addf %86, %87 : vector<1x128xf32>
    %89 = math.rsqrt %88 : vector<1x128xf32>
    %90 = vector.broadcast %89 : vector<1x128xf32> to vector<16x128xf32>
    %91 = arith.mulf %81, %90 : vector<16x128xf32>
    %c2 = arith.constant 2 : index
    %c0_49 = arith.constant 0 : index
    %c0_50 = arith.constant 0 : index
    %92 = vector.load %arg4[%c2, %c0_49, %c0_50] : memref<3x1x128xf32, #tpu.memory_space<vmem>>, vector<1x1x128xf32>
    %93 = vector.shape_cast %92 : vector<1x1x128xf32> to vector<1x128xf32>
    %94 = vector.broadcast %93 : vector<1x128xf32> to vector<16x128xf32>
    %95 = arith.mulf %91, %94 : vector<16x128xf32>
    %c2_51 = arith.constant 2 : index
    %c0_52 = arith.constant 0 : index
    %c0_53 = arith.constant 0 : index
    %96 = vector.load %arg5[%c2_51, %c0_52, %c0_53] : memref<3x1x128xf32, #tpu.memory_space<vmem>>, vector<1x1x128xf32>
    %97 = vector.shape_cast %96 : vector<1x1x128xf32> to vector<1x128xf32>
    %98 = vector.broadcast %97 : vector<1x128xf32> to vector<16x128xf32>
    %99 = arith.addf %95, %98 : vector<16x128xf32>
    %100 = arith.truncf %99 : vector<16x128xf32> to vector<16x128xbf16>
    %c2_54 = arith.constant 2 : index
    %c0_55 = arith.constant 0 : index
    %c0_56 = arith.constant 0 : index
    %101 = vector.load %arg2[%c2_54, %c0_55, %c0_56] : memref<3x128x128xbf16, #tpu.memory_space<vmem>>, vector<1x128x128xbf16>
    %102 = vector.shape_cast %101 : vector<1x128x128xbf16> to vector<128x128xbf16>
    %cst_57 = arith.constant dense<0.000000e+00> : vector<16x128xf32>
    %103 = tpu.matmul %100, %102, %cst_57 {dimension_numbers = #tpu.dot_dimension_numbers<[1], [0], [0], [1], [0, 0, 1, 1], [], []>} : vector<16x128xbf16>, vector<128x128xbf16>, vector<16x128xf32> -> vector<16x128xf32>
    %104 = arith.truncf %103 : vector<16x128xf32> to vector<16x128xbf16>
    %cst_58 = arith.constant dense<0.000000e+00> : vector<16x128xf32>
    %105 = tpu.matmul %0, %104, %cst_58 {dimension_numbers = #tpu.dot_dimension_numbers<[1], [0], [0], [1], [0, 0, 1, 1], [], []>} : vector<16x16xbf16>, vector<16x128xbf16>, vector<16x128xf32> -> vector<16x128xf32>
    %c2_59 = arith.constant 2 : index
    %c0_60 = arith.constant 0 : index
    %c0_61 = arith.constant 0 : index
    %106 = vector.load %arg3[%c2_59, %c0_60, %c0_61] : memref<3x1x128xf32, #tpu.memory_space<vmem>>, vector<1x1x128xf32>
    %107 = vector.shape_cast %106 : vector<1x1x128xf32> to vector<1x128xf32>
    %108 = vector.broadcast %107 : vector<1x128xf32> to vector<16x128xf32>
    %109 = arith.addf %105, %108 : vector<16x128xf32>
    %cst_62 = arith.constant 0.000000e+00 : f32
    %110 = vector.broadcast %cst_62 : f32 to vector<16x128xf32>
    %111 = arith.maximumf %109, %110 : vector<16x128xf32>
    %c0_63 = arith.constant 0 : index
    %c256 = arith.constant 256 : index
    %112 = vector.load %arg6[%c0_63, %c256] : memref<16x384xf32, #tpu.memory_space<vmem>>, vector<16x128xf32>
    tpu.vector_store %arg6[%c0_63, %c256], %111 {strides = array<i32>} : memref<16x384xf32, #tpu.memory_space<vmem>>, vector<16x128xf32>,
    return
  }
}

</mosaic_0001>

<llo_original>
// kernel: tpu_custom_call.1
$region0: #{tpu_custom_call.1}
  #allocation0 [shape = 'u32[]', space=smem, size = 0x4, offset = 0x4, fixed_abs, tag = 'smem constant byte address 0x4 - core index']
  #allocation1 [shape = 'u32[72,128]{1,0:T(1,128)}', space=vmem, size = 0x9000, scoped, tag = 'internal scratch']
  %s0 = inlined_call_operand.hbm [shape: f32[16,128], index: 0, kind: input, shape index: {}]
  %s1 = inlined_call_operand.hbm [shape: bf16[16,16], index: 1, kind: input, shape index: {}]
  %s2 = inlined_call_operand.hbm [shape: bf16[3,128,128], index: 2, kind: input, shape index: {}]
  %s3 = inlined_call_operand.hbm [shape: f32[3,1,128], index: 3, kind: input, shape index: {}]
  %s4 = inlined_call_operand.vmem [shape: f32[3,1,128], index: 4, kind: input, shape index: {}]
  %s5 = inlined_call_operand.hbm [shape: f32[3,1,128], index: 5, kind: input, shape index: {}]
  %s6 = inlined_call_operand.hbm [shape: f32[16,384], index: 6, kind: output, shape index: {}]
  %s7 = sld [smem:[#allocation0]]
  $region54: #{tpu_custom_call.1} parent=0
    _
  %s9 = ssub.s32 1, %s7
  %s10 = scalar_select 0, %s9, %s7
  $region1: #{tpu_custom_call.1} parent=0
    #allocation2 [shape = 'u8[8192]{0}', space=vmem, size = 0x2000, scoped, tag = 'input window, operand 0, single buffered']
    #allocation3 [shape = 's32[1]{0}', space=sflag, size = 0x4, scoped, tag = 'scoped memory for tpu_custom_call.1']
    #allocation4 [shape = 's32[1]{0}', space=sflag, size = 0x4, scoped, tag = 'scoped memory for tpu_custom_call.1']
    #allocation5 [shape = 'u8[4096]{0}', space=vmem, size = 0x1000, scoped, tag = 'input window, operand 1, single buffered']
    #allocation6 [shape = 's32[1]{0}', space=sflag, size = 0x4, scoped, tag = 'scoped memory for tpu_custom_call.1']
    #allocation7 [shape = 'u8[98304]{0}', space=vmem, size = 0x18000, scoped, tag = 'input window, operand 2, single buffered']
    #allocation8 [shape = 'u8[1536]{0}', space=vmem, size = 0x800, scoped, tag = 'input window, operand 3, single buffered']
    #allocation9 [shape = 's32[1]{0}', space=sflag, size = 0x4, scoped, tag = 'scoped memory for tpu_custom_call.1']
    #allocation10 [shape = 'u8[1536]{0}', space=vmem, size = 0x800, scoped, tag = 'input window, operand 5, single buffered']
    #allocation11 [shape = 'u8[24576]{0}', space=vmem, size = 0x6000, scoped, tag = 'output window, operand 0, single buffered']
    %11 = vsyncpa [#allocation3], 0
    %12 = vsyncpa [#allocation6], 0
    %13 = vsyncpa [#allocation9], 0
    %14 = vsyncpa [#allocation4], 0
    // Predicated region
    $region2: #{tpu_custom_call.1} parent=1 // pred_check
      _
    $region3: #{tpu_custom_call.1} parent=1 // pred_check_branch
      %16 = sbr.rel (0) target = $region5
    $region4: #{tpu_custom_call.1} parent=1 // pred_region
      %18 = vsyncadd [#allocation3], 0
      %s19 = sshll.u32 %s0, 4
      %s20 = int_to_ptr.hbm [resolvable:$true] %s19
      %s21 = sshll.u32 [#allocation2], 4
      %s22 = int_to_ptr.vmem [resolvable:$true] %s21
      %27 = dma.hbm_to_vmem [thread:$0]  %s20, 256, %s22, [#allocation3], 128, 128, 8
    $region5: #{tpu_custom_call.1} parent=1 // pred_fallthru
      _
    // Predicated region
    $region6: #{tpu_custom_call.1} parent=1 // pred_check
      _
    $region7: #{tpu_custom_call.1} parent=1 // pred_check_branch
      %29 = sbr.rel (0) target = $region9
    $region8: #{tpu_custom_call.1} parent=1 // pred_region
      %31 = vsyncadd [#allocation6], 0
      %s32 = sshll.u32 %s1, 4
      %s33 = int_to_ptr.hbm [resolvable:$true] %s32
      %s34 = sshll.u32 [#allocation5], 4
      %s35 = int_to_ptr.vmem [resolvable:$true] %s34
      %40 = dma.hbm_to_vmem [thread:$0]  %s33, 128, %s35, [#allocation6], 64, 64, 4
    $region9: #{tpu_custom_call.1} parent=1 // pred_fallthru
      _
    // Predicated region
    $region10: #{tpu_custom_call.1} parent=1 // pred_check
      _
    $region11: #{tpu_custom_call.1} parent=1 // pred_check_branch
      %42 = sbr.rel (0) target = $region13
    $region12: #{tpu_custom_call.1} parent=1 // pred_region
      %44 = vsyncadd [#allocation6], 0
      %s45 = sshll.u32 %s2, 4
      %s46 = int_to_ptr.hbm [resolvable:$true] %s45
      %s47 = sshll.u32 [#allocation7], 4
      %s48 = int_to_ptr.vmem [resolvable:$true] %s47
      %53 = dma.hbm_to_vmem [thread:$0]  %s46, 3072, %s48, [#allocation6], 64, 64, 4
    $region13: #{tpu_custom_call.1} parent=1 // pred_fallthru
      _
    // Predicated region
    $region14: #{tpu_custom_call.1} parent=1 // pred_check
      _
    $region15: #{tpu_custom_call.1} parent=1 // pred_check_branch
      %55 = sbr.rel (0) target = $region17
    $region16: #{tpu_custom_call.1} parent=1 // pred_region
      %57 = vsyncadd [#allocation9], 0
      %s58 = sshll.u32 %s3, 4
      %s59 = int_to_ptr.hbm [resolvable:$true] %s58
      %s60 = sshll.u32 [#allocation8], 4
      %s61 = int_to_ptr.vmem [resolvable:$true] %s60
      %66 = dma.hbm_to_vmem [thread:$0]  %s59, 48, %s61, [#allocation9], 16, 16, 1
    $region17: #{tpu_custom_call.1} parent=1 // pred_fallthru
      _
    // Predicated region
    $region18: #{tpu_custom_call.1} parent=1 // pred_check
      _
    $region19: #{tpu_custom_call.1} parent=1 // pred_check_branch
      %68 = sbr.rel (0) target = $region21
    $region20: #{tpu_custom_call.1} parent=1 // pred_region
      _
    $region21: #{tpu_custom_call.1} parent=1 // pred_fallthru
      _
    // Predicated region
    $region22: #{tpu_custom_call.1} parent=1 // pred_check
      _
    $region23: #{tpu_custom_call.1} parent=1 // pred_check_branch
      %70 = sbr.rel (0) target = $region25
    $region24: #{tpu_custom_call.1} parent=1 // pred_region
      %72 = vsyncadd [#allocation9], 0
      %s73 = sshll.u32 %s5, 4
      %s74 = int_to_ptr.hbm [resolvable:$true] %s73
      %s75 = sshll.u32 [#allocation10], 4
      %s76 = int_to_ptr.vmem [resolvable:$true] %s75
      %81 = dma.hbm_to_vmem [thread:$0]  %s74, 48, %s76, [#allocation9], 16, 16, 1
    $region25: #{tpu_custom_call.1} parent=1 // pred_fallthru
      _
    // Predicated region
    $region26: #{tpu_custom_call.1} parent=1 // pred_check
      _
    $region27: #{tpu_custom_call.1} parent=1 // pred_check_branch
      %83 = sbr.rel (0) target = $region29
    $region28: #{tpu_custom_call.1} parent=1 // pred_region
      %85 = dma.done [#allocation3], 256
    $region29: #{tpu_custom_call.1} parent=1 // pred_fallthru
      _
    // Predicated region
    $region30: #{tpu_custom_call.1} parent=1 // pred_check
      _
    $region31: #{tpu_custom_call.1} parent=1 // pred_check_branch
      %87 = sbr.rel (0) target = $region33
    $region32: #{tpu_custom_call.1} parent=1 // pred_region
      %89 = dma.done [#allocation6], 128
    $region33: #{tpu_custom_call.1} parent=1 // pred_fallthru
      _
    // Predicated region
    $region34: #{tpu_custom_call.1} parent=1 // pred_check
      _
    $region35: #{tpu_custom_call.1} parent=1 // pred_check_branch
      %91 = sbr.rel (0) target = $region37
    $region36: #{tpu_custom_call.1} parent=1 // pred_region
      %93 = dma.done [#allocation6], 3072
    $region37: #{tpu_custom_call.1} parent=1 // pred_fallthru
      _
    // Predicated region
    $region38: #{tpu_custom_call.1} parent=1 // pred_check
      _
    $region39: #{tpu_custom_call.1} parent=1 // pred_check_branch
      %95 = sbr.rel (0) target = $region41
    $region40: #{tpu_custom_call.1} parent=1 // pred_region
      %97 = dma.done [#allocation9], 48
    $region41: #{tpu_custom_call.1} parent=1 // pred_fallthru
      _
    // Predicated region
    $region42: #{tpu_custom_call.1} parent=1 // pred_check
      _
    $region43: #{tpu_custom_call.1} parent=1 // pred_check_branch
      %99 = sbr.rel (0) target = $region45
    $region44: #{tpu_custom_call.1} parent=1 // pred_region
      %101 = dma.done [#allocation9], 48
    $region45: #{tpu_custom_call.1} parent=1 // pred_fallthru
      _
    %v103 = vld [vmem:[#allocation5] sm:$0xf]
    %v104 = vld [vmem:[#allocation5 + $0x4] sm:$0xf]
    %v105 = vld [vmem:[#allocation2] sm:$0xff]
    %v106 = vld [vmem:[#allocation2 + $0x8] sm:$0xff]
    %v107 = vadd.f32 %v105, %v106
    %v108 = vrot.slane %v107, 4
    %v109 = vadd.f32 %v107, %v108
    %v110 = vrot.slane %v109, 2
    %v111 = vadd.f32 %v109, %v110
    %v112 = vrot.slane %v111, 1
    %v113 = vadd.f32 %v111, %v112
    %v114 = vrcp.pop 16.0
    %v115 = vmul.f32 16.0, %v114
    %v116 = vsub.f32 1.0, %v115
    %v117 = vmul.f32 %v114, %v116
    %v118 = vadd.f32 %v114, %v117
    %vm119 = vweird.f32 %v114
    %v120 = vsel %vm119, %v114, %v118
    %v121 = vmul.f32 %v113, %v120
    %v122 = vsub.f32 %v105, %v121
    %v123 = vsub.f32 %v106, %v121
    %v124 = vmul.f32 %v122, %v122
    %v125 = vmul.f32 %v123, %v123
    %v126 = vadd.f32 %v124, %v125
    %v127 = vrot.slane %v126, 4
    %v128 = vadd.f32 %v126, %v127
    %v129 = vrot.slane %v128, 2
    %v130 = vadd.f32 %v128, %v129
    %v131 = vrot.slane %v130, 1
    %v132 = vadd.f32 %v130, %v131
    %v133 = vmul.f32 %v132, %v120
    %v134 = vadd.f32 %v133, 1e-05
    %v135 = vrsqrt.pop %v134
    %v136 = vmul.f32 %v135, %v134
    %v137 = vmul.f32 %v136, %v135
    %v138 = vmul.f32 0.5, %v137
    %v139 = vsub.f32 1.5, %v138
    %v140 = vmul.f32 %v135, %v139
    %vm141 = vweird.f32 %v134
    %vm142 = vweird.f32 %v135
    %vm143 = vmor %vm141, %vm142
    %v144 = vsel %vm143, %v135, %v140
    %v145 = vmul.f32 %v122, %v144
    %v146 = vmul.f32 %v123, %v144
    %v147 = vld [vmem:[%s4] sm:$0x1]
    %v149 = vperm.slane %v147, 0
    %v151 = vmul.f32 %v145, %v149
    %v152 = vmul.f32 %v146, %v149
    %v153 = vld [vmem:[#allocation10] sm:$0x1]
    %v155 = vperm.slane %v153, 0
    %v157 = vadd.f32 %v151, %v155
    %v158 = vadd.f32 %v152, %v155
    %v159 = vpack.c.bf16 %v158, %v157
    %v160 = vld [vmem:[#allocation7] sm:$0xf]
    %v161 = vld [vmem:[#allocation7 + $0x4] sm:$0xf]
    %v162 = vld [vmem:[#allocation7 + $0x8] sm:$0xf]
    %v163 = vld [vmem:[#allocation7 + $0xc] sm:$0xf]
    %v164 = vld [vmem:[#allocation7 + $0x10] sm:$0xf]
    %v165 = vld [vmem:[#allocation7 + $0x14] sm:$0xf]
    %v166 = vld [vmem:[#allocation7 + $0x18] sm:$0xf]
    %v167 = vld [vmem:[#allocation7 + $0x1c] sm:$0xf]
    %v168 = vld [vmem:[#allocation7 + $0x20] sm:$0xf]
    %v169 = vld [vmem:[#allocation7 + $0x24] sm:$0xf]
    %v170 = vld [vmem:[#allocation7 + $0x28] sm:$0xf]
    %v171 = vld [vmem:[#allocation7 + $0x2c] sm:$0xf]
    %v172 = vld [vmem:[#allocation7 + $0x30] sm:$0xf]
    %v173 = vld [vmem:[#allocation7 + $0x34] sm:$0xf]
    %v174 = vld [vmem:[#allocation7 + $0x38] sm:$0xf]
    %v175 = vld [vmem:[#allocation7 + $0x3c] sm:$0xf]
    %v192 = vunpack.c.l.b16 %v160
    %v193 = vunpack.c.l.b16 %v161
    %v194 = vunpack.c.l.b16 %v162
    %v195 = vunpack.c.l.b16 %v163
    %v196 = vunpack.c.l.b16 %v164
    %v197 = vunpack.c.l.b16 %v165
    %v198 = vunpack.c.l.b16 %v166
    %v199 = vunpack.c.l.b16 %v167
    %v200 = vunpack.c.l.b16 %v168
    %v201 = vunpack.c.l.b16 %v169
    %v202 = vunpack.c.l.b16 %v170
    %v203 = vunpack.c.l.b16 %v171
    %v204 = vunpack.c.l.b16 %v172
    %v205 = vunpack.c.l.b16 %v173
    %v206 = vunpack.c.l.b16 %v174
    %v207 = vunpack.c.l.b16 %v175
    %v208 = vpack.c.b16 %v193, %v192
    %v209 = vpack.c.b16 %v195, %v194
    %v210 = vpack.c.b16 %v197, %v196
    %v211 = vpack.c.b16 %v199, %v198
    %v212 = vpack.c.b16 %v201, %v200
    %v213 = vpack.c.b16 %v203, %v202
    %v214 = vpack.c.b16 %v205, %v204
    %v215 = vpack.c.b16 %v207, %v206
    %224 = vmatpush.bf16.msra.mxu0 %v215
    %225 = vmatpush.bf16.msra.mxu0 %v214
    %226 = vmatpush.bf16.msra.mxu0 %v213
    %227 = vmatpush.bf16.msra.mxu0 %v212
    %228 = vmatpush.bf16.msra.mxu0 %v211
    %229 = vmatpush.bf16.msra.mxu0 %v210
    %230 = vmatpush.bf16.msra.mxu0 %v209
    %231 = vmatpush.bf16.msra.mxu0 %v208
    %232 = vmatmul.bf16.gmra.mxu0 %v159
    %v233 = vpop.f32.mrf.mxu0
    %v234 = vadd.f32 0.0, %v233
    %v235 = vpop.f32.mrf.mxu0
    %v236 = vadd.f32 0.0, %v235
    %237 = vdwg.mxu0
    %v238 = vpack.c.bf16 %v236, %v234
    %v239 = vld [vmem:[#allocation8] sm:$0x1]
    %v241 = vperm.slane %v239, 0
    %v245 = vunpack.c.l.b16 %v103
    %v246 = vunpack.c.l.b16 %v104
    %v247 = vpack.c.b16 %v246, %v245
    %vm248 = vcmask 130048
    %v250 = vsel %vm248, %v247, 0
    %252 = vmatpush.bf16.msra.mxu0 0
    %253 = vmatpush.bf16.msra.mxu0 0
    %254 = vmatpush.bf16.msra.mxu0 0
    %255 = vmatpush.bf16.msra.mxu0 0
    %256 = vmatpush.bf16.msra.mxu0 0
    %257 = vmatpush.bf16.msra.mxu0 0
    %258 = vmatpush.bf16.msra.mxu0 0
    %259 = vmatpush.bf16.msra.mxu0 %v238
    %260 = vmatmul.bf16.gmra.mxu0 %v250
    %v261 = vpop.f32.mrf.mxu0
    %v262 = vadd.f32 %v241, %v261
    %v263 = vpop.f32.mrf.mxu0
    %v264 = vadd.f32 %v241, %v263
    %265 = vdwg.mxu0
    %v266 = vmax.f32 %v262, 0.0
    %v267 = vmax.f32 %v264, 0.0
    %268 = vst [vmem:[#allocation11] sm:$0xff] %v266
    %269 = vst [vmem:[#allocation11 + $0x18] sm:$0xff] %v267
    %v270 = vadd.f32 %v266, %v267
    %v271 = vrot.slane %v270, 4
    %v272 = vadd.f32 %v270, %v271
    %v273 = vrot.slane %v272, 2
    %v274 = vadd.f32 %v272, %v273
    %v275 = vrot.slane %v274, 1
    %v276 = vadd.f32 %v274, %v275
    %v277 = vmul.f32 %v276, %v120
    %v278 = vsub.f32 %v266, %v277
    %v279 = vsub.f32 %v267, %v277
    %v280 = vmul.f32 %v278, %v278
    %v281 = vmul.f32 %v279, %v279
    %v282 = vadd.f32 %v280, %v281
    %v283 = vrot.slane %v282, 4
    %v284 = vadd.f32 %v282, %v283
    %v285 = vrot.slane %v284, 2
    %v286 = vadd.f32 %v284, %v285
    %v287 = vrot.slane %v286, 1
    %v288 = vadd.f32 %v286, %v287
    %v289 = vmul.f32 %v288, %v120
    %v290 = vadd.f32 %v289, 1e-05
    %v291 = vrsqrt.pop %v290
    %v292 = vmul.f32 %v291, %v290
    %v293 = vmul.f32 %v292, %v291
    %v294 = vmul.f32 0.5, %v293
    %v295 = vsub.f32 1.5, %v294
    %v296 = vmul.f32 %v291, %v295
    %vm297 = vweird.f32 %v290
    %vm298 = vweird.f32 %v291
    %vm299 = vmor %vm297, %vm298
    %v300 = vsel %vm299, %v291, %v296
    %v301 = vmul.f32 %v278, %v300
    %v302 = vmul.f32 %v279, %v300
    %s303 = scalar_lea.vmem %s4, 1
    %v304 = vld [vmem:[%s303] sm:$0x1]
    %v306 = vperm.slane %v304, 0
    %v308 = vmul.f32 %v301, %v306
    %v309 = vmul.f32 %v302, %v306
    %s310 = scalar_lea.vmem [#allocation10], 1
    %v311 = vld [vmem:[%s310] sm:$0x1]
    %v313 = vperm.slane %v311, 0
    %v315 = vadd.f32 %v308, %v313
    %v316 = vadd.f32 %v309, %v313
    %v317 = vpack.c.bf16 %v316, %v315
    %s318 = scalar_lea.vmem [#allocation7], 64
    %v319 = vld [vmem:[%s318] sm:$0xf]
    %v320 = vld [vmem:[%s318 + $0x4] sm:$0xf]
    %v321 = vld [vmem:[%s318 + $0x8] sm:$0xf]
    %v322 = vld [vmem:[%s318 + $0xc] sm:$0xf]
    %v323 = vld [vmem:[%s318 + $0x10] sm:$0xf]
    %v324 = vld [vmem:[%s318 + $0x14] sm:$0xf]
    %v325 = vld [vmem:[%s318 + $0x18] sm:$0xf]
    %v326 = vld [vmem:[%s318 + $0x1c] sm:$0xf]
    %v327 = vld [vmem:[%s318 + $0x20] sm:$0xf]
    %v328 = vld [vmem:[%s318 + $0x24] sm:$0xf]
    %v329 = vld [vmem:[%s318 + $0x28] sm:$0xf]
    %v330 = vld [vmem:[%s318 + $0x2c] sm:$0xf]
    %v331 = vld [vmem:[%s318 + $0x30] sm:$0xf]
    %v332 = vld [vmem:[%s318 + $0x34] sm:$0xf]
    %v333 = vld [vmem:[%s318 + $0x38] sm:$0xf]
    %v334 = vld [vmem:[%s318 + $0x3c] sm:$0xf]
    %v351 = vunpack.c.l.b16 %v319
    %v352 = vunpack.c.l.b16 %v320
    %v353 = vunpack.c.l.b16 %v321
    %v354 = vunpack.c.l.b16 %v322
    %v355 = vunpack.c.l.b16 %v323
    %v356 = vunpack.c.l.b16 %v324
    %v357 = vunpack.c.l.b16 %v325
    %v358 = vunpack.c.l.b16 %v326
    %v359 = vunpack.c.l.b16 %v327
    %v360 = vunpack.c.l.b16 %v328
    %v361 = vunpack.c.l.b16 %v329
    %v362 = vunpack.c.l.b16 %v330
    %v363 = vunpack.c.l.b16 %v331
    %v364 = vunpack.c.l.b16 %v332
    %v365 = vunpack.c.l.b16 %v333
    %v366 = vunpack.c.l.b16 %v334
    %v367 = vpack.c.b16 %v352, %v351
    %v368 = vpack.c.b16 %v354, %v353
    %v369 = vpack.c.b16 %v356, %v355
    %v370 = vpack.c.b16 %v358, %v357
    %v371 = vpack.c.b16 %v360, %v359
    %v372 = vpack.c.b16 %v362, %v361
    %v373 = vpack.c.b16 %v364, %v363
    %v374 = vpack.c.b16 %v366, %v365
    %383 = vmatpush.bf16.msra.mxu0 %v374
    %384 = vmatpush.bf16.msra.mxu0 %v373
    %385 = vmatpush.bf16.msra.mxu0 %v372
    %386 = vmatpush.bf16.msra.mxu0 %v371
    %387 = vmatpush.bf16.msra.mxu0 %v370
    %388 = vmatpush.bf16.msra.mxu0 %v369
    %389 = vmatpush.bf16.msra.mxu0 %v368
    %390 = vmatpush.bf16.msra.mxu0 %v367
    %391 = vmatmul.bf16.gmra.mxu0 %v317
    %v392 = vpop.f32.mrf.mxu0
    %v393 = vadd.f32 0.0, %v392
    %v394 = vpop.f32.mrf.mxu0
    %v395 = vadd.f32 0.0, %v394
    %396 = vdwg.mxu0
    %v397 = vpack.c.bf16 %v395, %v393
    %s398 = scalar_lea.vmem [#allocation8], 1
    %v399 = vld [vmem:[%s398] sm:$0x1]
    %v401 = vperm.slane %v399, 0
    %403 = vmatpush.bf16.msra.mxu0 0
    %404 = vmatpush.bf16.msra.mxu0 0
    %405 = vmatpush.bf16.msra.mxu0 0
    %406 = vmatpush.bf16.msra.mxu0 0
    %407 = vmatpush.bf16.msra.mxu0 0
    %408 = vmatpush.bf16.msra.mxu0 0
    %409 = vmatpush.bf16.msra.mxu0 0
    %410 = vmatpush.bf16.msra.mxu0 %v397
    %411 = vmatmul.bf16.gmra.mxu0 %v250
    %v412 = vpop.f32.mrf.mxu0
    %v413 = vadd.f32 %v401, %v412
    %v414 = vpop.f32.mrf.mxu0
    %v415 = vadd.f32 %v401, %v414
    %416 = vdwg.mxu0
    %v417 = vmax.f32 %v413, 0.0
    %v418 = vmax.f32 %v415, 0.0
    %419 = vst [vmem:[#allocation11 + $0x8] sm:$0xff] %v417
    %420 = vst [vmem:[#allocation11 + $0x20] sm:$0xff] %v418
    %v421 = vadd.f32 %v417, %v418
    %v422 = vrot.slane %v421, 4
    %v423 = vadd.f32 %v421, %v422
    %v424 = vrot.slane %v423, 2
    %v425 = vadd.f32 %v423, %v424
    %v426 = vrot.slane %v425, 1
    %v427 = vadd.f32 %v425, %v426
    %v428 = vmul.f32 %v427, %v120
    %v429 = vsub.f32 %v417, %v428
    %v430 = vsub.f32 %v418, %v428
    %v431 = vmul.f32 %v429, %v429
    %v432 = vmul.f32 %v430, %v430
    %v433 = vadd.f32 %v431, %v432
    %v434 = vrot.slane %v433, 4
    %v435 = vadd.f32 %v433, %v434
    %v436 = vrot.slane %v435, 2
    %v437 = vadd.f32 %v435, %v436
    %v438 = vrot.slane %v437, 1
    %v439 = vadd.f32 %v437, %v438
    %v440 = vmul.f32 %v439, %v120
    %v441 = vadd.f32 %v440, 1e-05
    %v442 = vrsqrt.pop %v441
    %v443 = vmul.f32 %v442, %v441
    %v444 = vmul.f32 %v443, %v442
    %v445 = vmul.f32 0.5, %v444
    %v446 = vsub.f32 1.5, %v445
    %v447 = vmul.f32 %v442, %v446
    %vm448 = vweird.f32 %v441
    %vm449 = vweird.f32 %v442
    %vm450 = vmor %vm448, %vm449
    %v451 = vsel %vm450, %v442, %v447
    %v452 = vmul.f32 %v429, %v451
    %v453 = vmul.f32 %v430, %v451
    %s454 = scalar_lea.vmem %s4, 2
    %v455 = vld [vmem:[%s454] sm:$0x1]
    %v457 = vperm.slane %v455, 0
    %v459 = vmul.f32 %v452, %v457
    %v460 = vmul.f32 %v453, %v457
    %s461 = scalar_lea.vmem [#allocation10], 2
    %v462 = vld [vmem:[%s461] sm:$0x1]
    %v464 = vperm.slane %v462, 0
    %v466 = vadd.f32 %v459, %v464
    %v467 = vadd.f32 %v460, %v464
    %v468 = vpack.c.bf16 %v467, %v466
    %s469 = scalar_lea.vmem [#allocation7], 128
    %v470 = vld [vmem:[%s469] sm:$0xf]
    %v471 = vld [vmem:[%s469 + $0x4] sm:$0xf]
    %v472 = vld [vmem:[%s469 + $0x8] sm:$0xf]
    %v473 = vld [vmem:[%s469 + $0xc] sm:$0xf]
    %v474 = vld [vmem:[%s469 + $0x10] sm:$0xf]
    %v475 = vld [vmem:[%s469 + $0x14] sm:$0xf]
    %v476 = vld [vmem:[%s469 + $0x18] sm:$0xf]
    %v477 = vld [vmem:[%s469 + $0x1c] sm:$0xf]
    %v478 = vld [vmem:[%s469 + $0x20] sm:$0xf]
    %v479 = vld [vmem:[%s469 + $0x24] sm:$0xf]
    %v480 = vld [vmem:[%s469 + $0x28] sm:$0xf]
    %v481 = vld [vmem:[%s469 + $0x2c] sm:$0xf]
    %v482 = vld [vmem:[%s469 + $0x30] sm:$0xf]
    %v483 = vld [vmem:[%s469 + $0x34] sm:$0xf]
    %v484 = vld [vmem:[%s469 + $0x38] sm:$0xf]
    %v485 = vld [vmem:[%s469 + $0x3c] sm:$0xf]
    %v502 = vunpack.c.l.b16 %v470
    %v503 = vunpack.c.l.b16 %v471
    %v504 = vunpack.c.l.b16 %v472
    %v505 = vunpack.c.l.b16 %v473
    %v506 = vunpack.c.l.b16 %v474
    %v507 = vunpack.c.l.b16 %v475
    %v508 = vunpack.c.l.b16 %v476
    %v509 = vunpack.c.l.b16 %v477
    %v510 = vunpack.c.l.b16 %v478
    %v511 = vunpack.c.l.b16 %v479
    %v512 = vunpack.c.l.b16 %v480
    %v513 = vunpack.c.l.b16 %v481
    %v514 = vunpack.c.l.b16 %v482
    %v515 = vunpack.c.l.b16 %v483
    %v516 = vunpack.c.l.b16 %v484
    %v517 = vunpack.c.l.b16 %v485
    %v518 = vpack.c.b16 %v503, %v502
    %v519 = vpack.c.b16 %v505, %v504
    %v520 = vpack.c.b16 %v507, %v506
    %v521 = vpack.c.b16 %v509, %v508
    %v522 = vpack.c.b16 %v511, %v510
    %v523 = vpack.c.b16 %v513, %v512
    %v524 = vpack.c.b16 %v515, %v514
    %v525 = vpack.c.b16 %v517, %v516
    %534 = vmatpush.bf16.msra.mxu0 %v525
    %535 = vmatpush.bf16.msra.mxu0 %v524
    %536 = vmatpush.bf16.msra.mxu0 %v523
    %537 = vmatpush.bf16.msra.mxu0 %v522
    %538 = vmatpush.bf16.msra.mxu0 %v521
    %539 = vmatpush.bf16.msra.mxu0 %v520
    %540 = vmatpush.bf16.msra.mxu0 %v519
    %541 = vmatpush.bf16.msra.mxu0 %v518
    %542 = vmatmul.bf16.gmra.mxu0 %v468
    %v543 = vpop.f32.mrf.mxu0
    %v544 = vadd.f32 0.0, %v543
    %v545 = vpop.f32.mrf.mxu0
    %v546 = vadd.f32 0.0, %v545
    %547 = vdwg.mxu0
    %v548 = vpack.c.bf16 %v546, %v544
    %s549 = scalar_lea.vmem [#allocation8], 2
    %v550 = vld [vmem:[%s549] sm:$0x1]
    %v552 = vperm.slane %v550, 0
    %554 = vmatpush.bf16.msra.mxu0 0
    %555 = vmatpush.bf16.msra.mxu0 0
    %556 = vmatpush.bf16.msra.mxu0 0
    %557 = vmatpush.bf16.msra.mxu0 0
    %558 = vmatpush.bf16.msra.mxu0 0
    %559 = vmatpush.bf16.msra.mxu0 0
    %560 = vmatpush.bf16.msra.mxu0 0
    %561 = vmatpush.bf16.msra.mxu0 %v548
    %562 = vmatmul.bf16.gmra.mxu0 %v250
    %v563 = vpop.f32.mrf.mxu0
    %v564 = vadd.f32 %v552, %v563
    %v565 = vpop.f32.mrf.mxu0
    %v566 = vadd.f32 %v552, %v565
    %567 = vdwg.mxu0
    %v568 = vmax.f32 %v564, 0.0
    %v569 = vmax.f32 %v566, 0.0
    %570 = vst [vmem:[#allocation11 + $0x10] sm:$0xff] %v568
    %571 = vst [vmem:[#allocation11 + $0x28] sm:$0xff] %v569
    // Predicated region
    $region46: #{tpu_custom_call.1} parent=1 // pred_check
      _
    $region47: #{tpu_custom_call.1} parent=1 // pred_check_branch
      %573 = sbr.rel (0) target = $region49
    $region48: #{tpu_custom_call.1} parent=1 // pred_region
      %575 = vsyncadd [#allocation4], 0
      %s576 = sshll.u32 [#allocation11], 4
      %s577 = int_to_ptr.vmem [resolvable:$true] %s576
      %s578 = sshll.u32 %s6, 4
      %s579 = int_to_ptr.hbm [resolvable:$true] %s578
      %584 = dma.vmem_to_hbm [thread:$0]  %s577, 768, %s579, [#allocation4], 384, 384, 24
    $region49: #{tpu_custom_call.1} parent=1 // pred_fallthru
      _
    // Predicated region
    $region50: #{tpu_custom_call.1} parent=1 // pred_check
      _
    $region51: #{tpu_custom_call.1} parent=1 // pred_check_branch
      %586 = sbr.rel (0) target = $region53
    $region52: #{tpu_custom_call.1} parent=1 // pred_region
      %588 = dma.done [#allocation4], 768
    $region53: #{tpu_custom_call.1} parent=1 // pred_fallthru
      _
    %589 = vsyncpa [#allocation3], 1
    %590 = vsyncpa [#allocation6], 1
    %591 = vsyncpa [#allocation9], 1
    %592 = vsyncpa [#allocation4], 1

</llo_original>
